<compile_context>
chip_gen: v6e
topology: v6e:2x2x1
jax: 0.10.0
libtpu: 0.0.40
codegen_flags: <defaults>
</compile_context>

<pallas_src>
import functools
import math

import numpy as np
import jax
import jax.numpy as jnp
from jax.experimental import pallas as pl
from jax.experimental.pallas import tpu as pltpu

MAX_TILE_M = 512  # row tile ceiling (sweepable 256/512/1024)


def _round_up(x, m):
    return ((x + m - 1) // m) * m


def _feature_pad_multiple():
    """256 on v6e/v7x (256-wide MXU), 128 on v5e; 128/256 are both always valid."""
    try:
        kind = jax.devices()[0].device_kind.lower()
        if "v5e" in kind or "v5 lite" in kind or "v5lite" in kind:
            return 128
    except Exception:
        pass
    return 256


def _vmem_ceiling_bytes():
    """~7/8 of physical VMEM (leaves headroom): ~112 MiB v5e/v6e, ~56 MiB v7x."""
    try:
        cap = getattr(pltpu.get_tpu_info(), "vmem_capacity_bytes", None)
        if cap:
            return int(cap) * 7 // 8
    except Exception:
        pass
    try:
        kind = jax.devices()[0].device_kind.lower()
        if "v7" in kind:
            return 56 * 1024 * 1024
        return 100 * 1024 * 1024
    except Exception:
        return 48 * 1024 * 1024


def _pick_tile_m(M, Dp, out_bytes, max_tile, budget):
    """Largest row tile whose double-buffered footprint fits the VMEM budget."""
    def need(t):
        return (2 * t * Dp * 2        # x tile, double-buffered, bf16
                + 2 * Dp * Dp * 2     # one layer's weight, double-buffered, bf16
                + 2 * Dp * 4          # bias row, double-buffered, f32
                + 2 * t * Dp * out_bytes  # output tile, double-buffered
                + t * Dp * 2)         # activation scratch, bf16
    tile = min(max_tile, _round_up(M, 8))
    while tile > 8 and need(tile) > budget:
        tile = max(8, _round_up(tile // 2, 8))
    # TODO(synk): if need(8) still exceeds the budget (huge Dp), K/N-tile the layer.
    return tile


# ----------------------------------------------------------------------------
# Fused multi-layer kernel body.
#   grid = (row_tiles, num_layers); layer axis is last / "arbitrary".
#   x_ref: (tile_m, Dp) bf16      w_ref: (1, Dp, Dp) bf16
#   b_ref: (1, 1, Dp)  f32        o_ref: (tile_m, Dp) out_dtype
#   h_ref: (tile_m, Dp) bf16 VMEM scratch (activation carried across layers)
# ----------------------------------------------------------------------------
def _mlp_fused_kernel(x_ref, w_ref, b_ref, o_ref, h_ref):
    l = pl.program_id(1)
    last = pl.num_programs(1) - 1

    @pl.when(l == 0)
    def _():
        h_ref[...] = x_ref[...]          # load this row tile's input once

    acc = jnp.dot(h_ref[...], w_ref[0],
                  preferred_element_type=jnp.float32) + b_ref[0]

    @pl.when(l != last)
    def _():
        h_ref[...] = jnp.maximum(acc, 0.0).astype(h_ref.dtype)   # ReLU epilogue

    @pl.when(l == last)
    def _():
        o_ref[...] = acc.astype(o_ref.dtype)                     # no ReLU on last


# ----------------------------------------------------------------------------
# One-time parameter packing (outside the forward path).
# ----------------------------------------------------------------------------
def pack_mlp_params(params, *, feature_pad=None):
    """Transpose torch-layout (out,in) weights to (in,out), zero-pad every
    feature dim to a common lane-dense Dp, stack layers, cast weights to bf16."""
    if feature_pad is None:
        feature_pad = _feature_pad_multiple()
    dims = [params[0]["w"].shape[1]] + [p["w"].shape[0] for p in params]
    Dp = _round_up(max(dims), feature_pad)
    L = len(params)
    w_stack = jnp.zeros((L, Dp, Dp), jnp.bfloat16)
    b_stack = jnp.zeros((L, 1, Dp), jnp.float32)
    for li, p in enumerate(params):
        n_out, n_in = p["w"].shape
        w_stack = w_stack.at[li, :n_in, :n_out].set(p["w"].T.astype(jnp.bfloat16))
        b_stack = b_stack.at[li, 0, :n_out].set(p["b"].astype(jnp.float32))
    return {"w": w_stack, "b": b_stack,
            "input_dim": int(dims[0]), "output_dim": int(dims[-1])}


# ----------------------------------------------------------------------------
# MLP forward (matches MLP.forward: ReLU on all layers except the last).
# ----------------------------------------------------------------------------
def mlp_forward(x, packed, *, out_dtype=jnp.float32, max_tile_m=MAX_TILE_M):
    w_stack, b_stack = packed["w"], packed["b"]
    in_dim, out_dim = packed["input_dim"], packed["output_dim"]
    L, Dp, _ = w_stack.shape

    lead = x.shape[:-1]
    assert x.shape[-1] == in_dim
    M = math.prod(lead) if lead else 1

    out_bytes = np.dtype(out_dtype).itemsize
    vmem_ceiling = _vmem_ceiling_bytes()
    tile_m = _pick_tile_m(M, Dp, out_bytes, max_tile_m, int(vmem_ceiling * 0.9))
    Mp = _round_up(M, tile_m)

    # pad rows + input features ONCE (bf16 before padding to halve pad bytes)
    h = x.reshape(M, in_dim).astype(jnp.bfloat16)
    h = jnp.pad(h, ((0, Mp - M), (0, Dp - in_dim)))

    out = pl.pallas_call(
        _mlp_fused_kernel,
        out_shape=jax.ShapeDtypeStruct((Mp, Dp), out_dtype),
        grid_spec=pltpu.PrefetchScalarGridSpec(
            num_scalar_prefetch=0,
            grid=(Mp // tile_m, L),
            in_specs=[
                pl.BlockSpec((tile_m, Dp), lambda i, l: (i, 0)),   # activations
                pl.BlockSpec((1, Dp, Dp), lambda i, l: (l, 0, 0)),  # layer weight
                pl.BlockSpec((1, 1, Dp), lambda i, l: (l, 0, 0)),   # layer bias
            ],
            out_specs=pl.BlockSpec((tile_m, Dp), lambda i, l: (i, 0)),
            scratch_shapes=[pltpu.VMEM((tile_m, Dp), jnp.bfloat16)],
        ),
        compiler_params=pltpu.CompilerParams(
            dimension_semantics=("parallel", "arbitrary"),
            vmem_limit_bytes=int(vmem_ceiling)),
    )(h, w_stack, b_stack)

    # drop row padding and zero-padded output channels, restore leading dims
    return out[:M, :out_dim].reshape(*lead, out_dim)


# ----------------------------------------------------------------------------
# Parameters (deterministic, synthetic) mirroring the PyTorch MLP
# ----------------------------------------------------------------------------
def _xavier_normal(key, out_features, in_features):
    std = math.sqrt(2.0 / (in_features + out_features))
    return std * jax.random.normal(key, (out_features, in_features), jnp.float32)


def make_mlp_params(key, input_dim, hidden_dim, output_dim, num_layers):
    dims = [input_dim] + [hidden_dim] * (num_layers - 1) + [output_dim]
    keys = jax.random.split(key, 2 * num_layers)
    params = []
    for li in range(num_layers):
        n_in, n_out = dims[li], dims[li + 1]
        w = _xavier_normal(keys[2 * li], n_out, n_in)     # torch layout (out, in)
        bound = 1.0 / math.sqrt(n_in)                     # nn.Linear default bias init
        b = jax.random.uniform(keys[2 * li + 1], (n_out,), jnp.float32,
                               minval=-bound, maxval=bound)
        params.append({"w": w, "b": b})
    return params


def mlp_reference(x, params):
    """Pure-JAX f32 reference of the PyTorch forward."""
    h = x
    for li, p in enumerate(params):
        h = h @ p["w"].T + p["b"]
        if li < len(params) - 1:
            h = jnp.maximum(h, 0.0)
    return h


if __name__ == "__main__":
    key = jax.random.PRNGKey(0)
    kx, kp = jax.random.split(key)

    batch, seq = 2, 8
    input_dim, hidden_dim, output_dim, num_layers = 16, 32, 8, 3

    x = jax.random.normal(kx, (batch, seq, input_dim), jnp.float32)
    params = make_mlp_params(kp, input_dim, hidden_dim, output_dim, num_layers)

    packed = pack_mlp_params(params)          # one-time weight prep (bf16, padded)

    out = mlp_forward(x, packed)
    out = jax.block_until_ready(out)

    assert out.shape == (batch, seq, output_dim), out.shape
    assert bool(jnp.all(jnp.isfinite(out)))

    ref = mlp_reference(x, params)
    assert bool(jnp.allclose(out, ref, rtol=5e-2, atol=5e-2)), \
        float(jnp.max(jnp.abs(out - ref)))

    print("KERNEL_OK")
</pallas_src>

<mosaic_0001>
module attributes {stable_mosaic.version = 11 : i64} {
  func.func @_mlp_fused_kernel(%arg0: i32, %arg1: i32, %arg2: memref<16x256xbf16, #tpu.memory_space<vmem>>, %arg3: memref<1x256x256xbf16, #tpu.memory_space<vmem>>, %arg4: memref<1x1x256xf32, #tpu.memory_space<vmem>>, %arg5: memref<16x256xf32, #tpu.memory_space<vmem>>, %arg6: memref<16x256xbf16, #tpu.memory_space<vmem>>) attributes {dimension_semantics = [#tpu.dimension_semantics<parallel>, #tpu.dimension_semantics<arbitrary>], iteration_bounds = array<i64: 1, 3>, scalar_prefetch = 0 : i64, scratch_operands = 1 : i64, tpu.core_type = #tpu.core_type<tc>, window_params = [{transform_indices = @transform_0, window_bounds = array<i64: 16, 256>}, {transform_indices = @transform_1, window_bounds = array<i64: 1, 256, 256>}, {transform_indices = @transform_2, window_bounds = array<i64: 1, 1, 256>}, {transform_indices = @transform_3, window_bounds = array<i64: 16, 256>}]} {
    %c0_i32 = arith.constant 0 : i32
    %0 = arith.cmpi eq, %arg1, %c0_i32 : i32
    %1 = arith.extui %0 : i1 to i32
    %c0_i32_0 = arith.constant 0 : i32
    %2 = arith.cmpi ne, %1, %c0_i32_0 : i32
    scf.if %2 {
      %c0_11 = arith.constant 0 : index
      %c0_12 = arith.constant 0 : index
      %17 = vector.load %arg2[%c0_11, %c0_12] : memref<16x256xbf16, #tpu.memory_space<vmem>>, vector<16x256xbf16>
      %c0_13 = arith.constant 0 : index
      %c0_14 = arith.constant 0 : index
      %18 = vector.load %arg6[%c0_13, %c0_14] : memref<16x256xbf16, #tpu.memory_space<vmem>>, vector<16x256xbf16>
      tpu.vector_store %arg6[%c0_13, %c0_14], %17 {strides = array<i32>} : memref<16x256xbf16, #tpu.memory_space<vmem>>, vector<16x256xbf16>,
    } else {
    }
    %c0 = arith.constant 0 : index
    %c0_1 = arith.constant 0 : index
    %3 = vector.load %arg6[%c0, %c0_1] : memref<16x256xbf16, #tpu.memory_space<vmem>>, vector<16x256xbf16>
    %c0_2 = arith.constant 0 : index
    %c0_3 = arith.constant 0 : index
    %c0_4 = arith.constant 0 : index
    %4 = vector.load %arg3[%c0_2, %c0_3, %c0_4] : memref<1x256x256xbf16, #tpu.memory_space<vmem>>, vector<1x256x256xbf16>
    %5 = vector.shape_cast %4 : vector<1x256x256xbf16> to vector<256x256xbf16>
    %cst = arith.constant dense<0.000000e+00> : vector<16x256xf32>
    %6 = tpu.matmul %3, %5, %cst {dimension_numbers = #tpu.dot_dimension_numbers<[1], [0], [0], [1], [0, 0, 1, 1], [], []>} : vector<16x256xbf16>, vector<256x256xbf16>, vector<16x256xf32> -> vector<16x256xf32>
    %c0_5 = arith.constant 0 : index
    %c0_6 = arith.constant 0 : index
    %c0_7 = arith.constant 0 : index
    %7 = vector.load %arg4[%c0_5, %c0_6, %c0_7] : memref<1x1x256xf32, #tpu.memory_space<vmem>>, vector<1x1x256xf32>
    %8 = vector.shape_cast %7 : vector<1x1x256xf32> to vector<1x256xf32>
    %9 = vector.broadcast %8 : vector<1x256xf32> to vector<16x256xf32>
    %10 = arith.addf %6, %9 : vector<16x256xf32>
    %c2_i32 = arith.constant 2 : i32
    %11 = arith.cmpi ne, %arg1, %c2_i32 : i32
    %12 = arith.extui %11 : i1 to i32
    %c0_i32_8 = arith.constant 0 : i32
    %13 = arith.cmpi ne, %12, %c0_i32_8 : i32
    scf.if %13 {
      %cst_11 = arith.constant 0.000000e+00 : f32
      %17 = vector.broadcast %cst_11 : f32 to vector<16x256xf32>
      %18 = arith.maximumf %10, %17 : vector<16x256xf32>
      %19 = arith.truncf %18 : vector<16x256xf32> to vector<16x256xbf16>
      %c0_12 = arith.constant 0 : index
      %c0_13 = arith.constant 0 : index
      %20 = vector.load %arg6[%c0_12, %c0_13] : memref<16x256xbf16, #tpu.memory_space<vmem>>, vector<16x256xbf16>
      tpu.vector_store %arg6[%c0_12, %c0_13], %19 {strides = array<i32>} : memref<16x256xbf16, #tpu.memory_space<vmem>>, vector<16x256xbf16>,
    } else {
    }
    %c2_i32_9 = arith.constant 2 : i32
    %14 = arith.cmpi eq, %arg1, %c2_i32_9 : i32
    %15 = arith.extui %14 : i1 to i32
    %c0_i32_10 = arith.constant 0 : i32
    %16 = arith.cmpi ne, %15, %c0_i32_10 : i32
    scf.if %16 {
      %c0_11 = arith.constant 0 : index
      %c0_12 = arith.constant 0 : index
      %17 = vector.load %arg5[%c0_11, %c0_12] : memref<16x256xf32, #tpu.memory_space<vmem>>, vector<16x256xf32>
      tpu.vector_store %arg5[%c0_11, %c0_12], %10 {strides = array<i32>} : memref<16x256xf32, #tpu.memory_space<vmem>>, vector<16x256xf32>,
    } else {
    }
    return
  }
  func.func @transform_0(%arg0: i32, %arg1: i32) -> (i32, i32) {
    %c0_i32 = arith.constant 0 : i32
    %c0_i32_0 = arith.constant 0 : i32
    return %arg0, %c0_i32 : i32, i32
  }
  func.func @transform_1(%arg0: i32, %arg1: i32) -> (i32, i32, i32) {
    %c0_i32 = arith.constant 0 : i32
    %c0_i32_0 = arith.constant 0 : i32
    %c0_i32_1 = arith.constant 0 : i32
    return %arg1, %c0_i32, %c0_i32_0 : i32, i32, i32
  }
  func.func @transform_2(%arg0: i32, %arg1: i32) -> (i32, i32, i32) {
    %c0_i32 = arith.constant 0 : i32
    %c0_i32_0 = arith.constant 0 : i32
    %c0_i32_1 = arith.constant 0 : i32
    return %arg1, %c0_i32, %c0_i32_0 : i32, i32, i32
  }
  func.func @transform_3(%arg0: i32, %arg1: i32) -> (i32, i32) {
    %c0_i32 = arith.constant 0 : i32
    %c0_i32_0 = arith.constant 0 : i32
    return %arg0, %c0_i32 : i32, i32
  }
}

</mosaic_0001>

<llo_original>
// kernel: tpu_custom_call.1
$region0: #{tpu_custom_call.1}
  #allocation0 [shape = 'u32[]', space=smem, size = 0x4, offset = 0x4, fixed_abs, tag = 'smem constant byte address 0x4 - core index']
  #allocation1 [shape = 'u32[144,128]{1,0:T(1,128)}', space=vmem, size = 0x12000, scoped, tag = 'internal scratch']
  #allocation2 [shape = 'bf16[16,256]{1,0:T(8,128)(2,1)}', space=vmem, size = 0x2000, scoped, tag = 'scratch operand']
  %s0 = inlined_call_operand.hbm [shape: bf16[16,256], index: 0, kind: input, shape index: {}]
  %s1 = inlined_call_operand.hbm [shape: bf16[3,256,256], index: 1, kind: input, shape index: {}]
  %s2 = inlined_call_operand.hbm [shape: f32[3,1,256], index: 2, kind: input, shape index: {}]
  %s3 = inlined_call_operand.hbm [shape: f32[16,256], index: 3, kind: output, shape index: {}]
  %s4 = sld [smem:[#allocation0]]
  $region69: #{tpu_custom_call.1} parent=0
    _
  %s6 = ssub.s32 1, %s4
  %s7 = scalar_select 0, %s6, %s4
  $region1: #{tpu_custom_call.1} parent=0
    #allocation3 [shape = 'u8[8192]{0}', space=vmem, size = 0x2000, scoped, tag = 'input window, operand 0, single buffered']
    #allocation4 [shape = 's32[2]{0}', space=sflag, size = 0x8, scoped, tag = 'scoped memory for tpu_custom_call.1']
    #allocation5 [shape = 's32[2]{0}', space=sflag, size = 0x8, scoped, tag = 'scoped memory for tpu_custom_call.1']
    #allocation6 [shape = 'u8[262144]{0}', space=vmem, size = 0x40000, scoped, tag = 'input window, operand 1']
    #allocation7 [shape = 's32[2]{0}', space=sflag, size = 0x8, scoped, tag = 'scoped memory for tpu_custom_call.1']
    #allocation8 [shape = 'u8[2048]{0}', space=vmem, size = 0x800, scoped, tag = 'input window, operand 2']
    #allocation9 [shape = 'u8[16384]{0}', space=vmem, size = 0x4000, scoped, tag = 'output window, operand 0, single buffered']
    %8 = vsyncpa [#allocation4], 0
    %9 = vsyncpa [#allocation7], 0
    %s10 = scalar_lea.sflag [#allocation7], 1
    %11 = vsyncpa %s10, 0
    %12 = vsyncpa [#allocation5], 0
    loop: start=0, step=1, limit=5
    $region2: #{tpu_custom_call.1} parent=1 // loop_pre_header
      _
    $region3: #{tpu_custom_call.1} parent=1 // loop_header
      %s14 = sphi 0, %s18
      %p15 = scmp.ge.s32.totalorder %s14, 5
      %s21 = sphi 0, %s33
      %s22 = sphi 0, %s29
      %s23 = sphi 0, %s21
      %s24 = sphi 0, %s22
      %s25 = sphi 0, %s23
      %s26 = sphi 0, %s24
      %s36 = sphi 0, %s38
      %s39 = sphi 0, %s36
      %s40 = sphi 0, %s39
      %s56 = sphi 0, %s40
      %s62 = sphi 0, %s64
      %s65 = sphi 0, %s62
      %s66 = sphi 0, %s65
      %s82 = sphi 0, %s66
      %s88 = sphi 0, %s90
      %s91 = sphi 0, %s88
      %s92 = sphi 0, %s91
      %s108 = sphi 0, %s92
      %s114 = sphi 0, %s116
      %s117 = sphi 0, %s114
      %s118 = sphi 0, %s117
      %s134 = sphi 0, %s118
    $region4: #{tpu_custom_call.1} parent=1 // loop_header_branch
      %17 = sbr.rel (%p15) target = $region8
    $region5: #{tpu_custom_call.1} parent=1 // loop_body
      %s19 = ssub.s32 %s14, 1
      %s20 = ssub.s32 %s14, 2
      %s27 = sadd.s32 1, %s22
      %p28 = scmp.ge.s32.totalorder %s27, 3
      %s29 = scalar_select %p28, 0, %s27
      %s30 = sadd.s32 1, %s21
      %s31 = scalar_select %p28, %s30, %s21
      %p32 = scmp.ge.s32.totalorder %s31, 1
      %s33 = scalar_select %p32, 0, %s31
      %s34 = ssub.s32 %s21, %s33
      %p35 = scmp.eq.s32.totalorder %s34, 0
      %s37 = sadd.s32 %s36, 1
      %s38 = scalar_select %p35, %s36, %s37
      %p41 = pneg %p35
      %p42 = scmp.eq.s32.totalorder %s14, 2
      %p43 = por %p41, %p42
      %p44 = scmp.ne.s32.totalorder %s36, %s39
      %p45 = scmp.eq.s32.totalorder %s14, 0
      %p46 = por %p44, %p45
      %p47 = scmp.ne.s32.totalorder %s36, %s39
      %p48 = scmp.eq.s32.totalorder %s19, 2
      %p49 = por %p47, %p48
      %p50 = scmp.ne.s32.totalorder %s39, %s40
      %p51 = scmp.eq.s32.totalorder %s19, 0
      %p52 = por %p50, %p51
      %p53 = scmp.ne.s32.totalorder %s39, %s40
      %p54 = scmp.eq.s32.totalorder %s20, 2
      %p55 = por %p53, %p54
      %p57 = scmp.ne.s32.totalorder %s40, %s56
      %p58 = scmp.eq.s32.totalorder %s20, 0
      %p59 = por %p57, %p58
      %s60 = ssub.s32 %s22, %s29
      %p61 = scmp.eq.s32.totalorder %s60, 0
      %s63 = sadd.s32 %s62, 1
      %s64 = scalar_select %p61, %s62, %s63
      %p67 = pneg %p61
      %p68 = scmp.eq.s32.totalorder %s14, 2
      %p69 = por %p67, %p68
      %p70 = scmp.ne.s32.totalorder %s62, %s65
      %p71 = scmp.eq.s32.totalorder %s14, 0
      %p72 = por %p70, %p71
      %p73 = scmp.ne.s32.totalorder %s62, %s65
      %p74 = scmp.eq.s32.totalorder %s19, 2
      %p75 = por %p73, %p74
      %p76 = scmp.ne.s32.totalorder %s65, %s66
      %p77 = scmp.eq.s32.totalorder %s19, 0
      %p78 = por %p76, %p77
      %p79 = scmp.ne.s32.totalorder %s65, %s66
      %p80 = scmp.eq.s32.totalorder %s20, 2
      %p81 = por %p79, %p80
      %p83 = scmp.ne.s32.totalorder %s66, %s82
      %p84 = scmp.eq.s32.totalorder %s20, 0
      %p85 = por %p83, %p84
      %s86 = ssub.s32 %s22, %s29
      %p87 = scmp.eq.s32.totalorder %s86, 0
      %s89 = sadd.s32 %s88, 1
      %s90 = scalar_select %p87, %s88, %s89
      %p93 = pneg %p87
      %p94 = scmp.eq.s32.totalorder %s14, 2
      %p95 = por %p93, %p94
      %p96 = scmp.ne.s32.totalorder %s88, %s91
      %p97 = scmp.eq.s32.totalorder %s14, 0
      %p98 = por %p96, %p97
      %p99 = scmp.ne.s32.totalorder %s88, %s91
      %p100 = scmp.eq.s32.totalorder %s19, 2
      %p101 = por %p99, %p100
      %p102 = scmp.ne.s32.totalorder %s91, %s92
      %p103 = scmp.eq.s32.totalorder %s19, 0
      %p104 = por %p102, %p103
      %p105 = scmp.ne.s32.totalorder %s91, %s92
      %p106 = scmp.eq.s32.totalorder %s20, 2
      %p107 = por %p105, %p106
      %p109 = scmp.ne.s32.totalorder %s92, %s108
      %p110 = scmp.eq.s32.totalorder %s20, 0
      %p111 = por %p109, %p110
      %s112 = ssub.s32 %s21, %s33
      %p113 = scmp.eq.s32.totalorder %s112, 0
      %s115 = sadd.s32 %s114, 1
      %s116 = scalar_select %p113, %s114, %s115
      %p119 = pneg %p113
      %p120 = scmp.eq.s32.totalorder %s14, 2
      %p121 = por %p119, %p120
      %p122 = scmp.ne.s32.totalorder %s114, %s117
      %p123 = scmp.eq.s32.totalorder %s14, 0
      %p124 = por %p122, %p123
      %p125 = scmp.ne.s32.totalorder %s114, %s117
      %p126 = scmp.eq.s32.totalorder %s19, 2
      %p127 = por %p125, %p126
      %p128 = scmp.ne.s32.totalorder %s117, %s118
      %p129 = scmp.eq.s32.totalorder %s19, 0
      %p130 = por %p128, %p129
      %p131 = scmp.ne.s32.totalorder %s117, %s118
      %p132 = scmp.eq.s32.totalorder %s20, 2
      %p133 = por %p131, %p132
      %p135 = scmp.ne.s32.totalorder %s118, %s134
      %p136 = scmp.eq.s32.totalorder %s20, 0
      %p137 = por %p135, %p136
      %p138 = scmp.le.s32.totalorder 1, %s14
      %p139 = scmp.lt.s32.totalorder %s14, 4
      %p140 = pnand %p138, %p139
      %p141 = pneg %p140
      // Predicated region
      $region9: #{tpu_custom_call.1} parent=5 // pred_check
        _
      $region10: #{tpu_custom_call.1} parent=5 // pred_check_branch
        %143 = sbr.rel (%p140) target = $region12
      $region11: #{tpu_custom_call.1} parent=5 // pred_region
        %s144 = ssub.s32 %s14, 1
        // Predicated region
        $region13: #{tpu_custom_call.1} parent=11 // pred_check
          %p145 = pneg %p52
        $region14: #{tpu_custom_call.1} parent=11 // pred_check_branch
          %147 = sbr.rel (%p145) target = $region16
        $region15: #{tpu_custom_call.1} parent=11 // pred_region
          %s148 = smul.u32 2, %s23
          %s150 = ssub.s32 256, 256
          %151 = vsyncadd [#allocation4], %s150
          %s152 = smul.addr %s148, 2
          %s153 = smul.addr %s152, 64
          %s154 = scalar_lea.hbm %s0, %s153
          %s155 = sshll.u32 [#allocation3], 4
          %s156 = int_to_ptr.vmem [resolvable:$true] %s155
          %161 = dma.hbm_to_vmem [thread:$0]  %s154, 256, %s156, [#allocation4], 128, 128, 8
        $region16: #{tpu_custom_call.1} parent=11 // pred_fallthru
          _
      $region12: #{tpu_custom_call.1} parent=5 // pred_fallthru
        _
      %p162 = scmp.lt.s32.totalorder %s14, 3
      // Predicated region
      $region17: #{tpu_custom_call.1} parent=5 // pred_check
        %p163 = pneg %p162
      $region18: #{tpu_custom_call.1} parent=5 // pred_check_branch
        %165 = sbr.rel (%p163) target = $region20
      $region19: #{tpu_custom_call.1} parent=5 // pred_region
        // Predicated region
        $region21: #{tpu_custom_call.1} parent=19 // pred_check
          %p166 = pneg %p72
        $region22: #{tpu_custom_call.1} parent=19 // pred_check_branch
          %168 = sbr.rel (%p166) target = $region24
        $region23: #{tpu_custom_call.1} parent=19 // pred_region
          %s169 = sand.u32 %s14, 1
          %s170 = scalar_lea.sflag [#allocation7], %s169
          %s171 = sand.u32 %s62, 1
          %s172 = smul.addr %s171, 256
          %s173 = scalar_lea.vmem [#allocation6], %s172
          %s175 = ssub.s32 4096, 4096
          %176 = vsyncadd %s170, %s175
          %s177 = smul.addr %s22, 64
          %s178 = smul.addr %s177, 64
          %s179 = scalar_lea.hbm %s1, %s178
          %s180 = sshll.u32 %s173, 4
          %s181 = int_to_ptr.vmem [resolvable:$true] %s180
          %186 = dma.hbm_to_vmem [thread:$0]  %s179, 4096, %s181, %s170, 128, 128, 8
        $region24: #{tpu_custom_call.1} parent=19 // pred_fallthru
          _
        // Predicated region
        $region25: #{tpu_custom_call.1} parent=19 // pred_check
          %p187 = pneg %p98
        $region26: #{tpu_custom_call.1} parent=19 // pred_check_branch
          %189 = sbr.rel (%p187) target = $region28
        $region27: #{tpu_custom_call.1} parent=19 // pred_region
          %s190 = sand.u32 %s14, 1
          %s191 = scalar_lea.sflag [#allocation7], %s190
          %s192 = sand.u32 %s88, 1
          %s193 = smul.addr %s192, 2
          %s194 = scalar_lea.vmem [#allocation8], %s193
          %s196 = ssub.s32 32, 32
          %197 = vsyncadd %s191, %s196
          %s198 = smul.addr %s22, 2
          %s199 = smul.addr %s198, 16
          %s200 = scalar_lea.hbm %s2, %s199
          %s202 = sshll.u32 %s194, 4
          %s203 = int_to_ptr.vmem [resolvable:$true] %s202
          %205 = dma.hbm_to_vmem [thread:$0]  %s200, 32, %s203, %s191
        $region28: #{tpu_custom_call.1} parent=19 // pred_fallthru
          _
      $region20: #{tpu_custom_call.1} parent=5 // pred_fallthru
        _
      %p206 = scmp.le.s32.totalorder 1, %s14
      %p207 = scmp.lt.s32.totalorder %s14, 4
      %p208 = pnand %p206, %p207
      %p209 = pneg %p208
      // Predicated region
      $region29: #{tpu_custom_call.1} parent=5 // pred_check
        _
      $region30: #{tpu_custom_call.1} parent=5 // pred_check_branch
        %211 = sbr.rel (%p208) target = $region32
      $region31: #{tpu_custom_call.1} parent=5 // pred_region
        %s212 = ssub.s32 %s14, 1
        // Predicated region
        $region33: #{tpu_custom_call.1} parent=31 // pred_check
          %p213 = pneg %p52
        $region34: #{tpu_custom_call.1} parent=31 // pred_check_branch
          %215 = sbr.rel (%p213) target = $region36
        $region35: #{tpu_custom_call.1} parent=31 // pred_region
          %216 = dma.done [#allocation4], 256
        $region36: #{tpu_custom_call.1} parent=31 // pred_fallthru
          _
        %s217 = sand.u32 %s19, 1
        %s218 = scalar_lea.sflag [#allocation7], %s217
        %s219 = sand.u32 %s65, 1
        %s220 = smul.addr %s219, 256
        %s221 = scalar_lea.vmem [#allocation6], %s220
        // Predicated region
        $region37: #{tpu_custom_call.1} parent=31 // pred_check
          %p222 = pneg %p78
        $region38: #{tpu_custom_call.1} parent=31 // pred_check_branch
          %224 = sbr.rel (%p222) target = $region40
        $region39: #{tpu_custom_call.1} parent=31 // pred_region
          %225 = dma.done %s218, 4096
        $region40: #{tpu_custom_call.1} parent=31 // pred_fallthru
          _
        %s226 = sand.u32 %s19, 1
        %s227 = scalar_lea.sflag [#allocation7], %s226
        %s228 = sand.u32 %s91, 1
        %s229 = smul.addr %s228, 2
        %s230 = scalar_lea.vmem [#allocation8], %s229
        // Predicated region
        $region41: #{tpu_custom_call.1} parent=31 // pred_check
          %p231 = pneg %p104
        $region42: #{tpu_custom_call.1} parent=31 // pred_check_branch
          %233 = sbr.rel (%p231) target = $region44
        $region43: #{tpu_custom_call.1} parent=31 // pred_region
          %234 = dma.done %s227, 32
        $region44: #{tpu_custom_call.1} parent=31 // pred_fallthru
          _
        %p235 = pneg %p52
        %p236 = pneg %p49
        %s237 = sand.u32 %s19, 1
        %s238 = scalar_lea.sflag [#allocation7], %s237
        %s239 = sand.u32 %s65, 1
        %s240 = smul.addr %s239, 256
        %s241 = scalar_lea.vmem [#allocation6], %s240
        %p242 = pneg %p78
        %p243 = pneg %p75
        %s244 = sand.u32 %s19, 1
        %s245 = scalar_lea.sflag [#allocation7], %s244
        %s246 = sand.u32 %s91, 1
        %s247 = smul.addr %s246, 2
        %s248 = scalar_lea.vmem [#allocation8], %s247
        %p249 = pneg %p104
        %p250 = pneg %p101
        %p251 = pneg %p130
        %p252 = pneg %p127
        %s253 = smul.u32 2, %s23
        %s254 = smul.u32 2, %s23
        %p255 = scmp.eq.s32.totalorder %s24, 0
        // Predicated region
        $region45: #{tpu_custom_call.1} parent=31 // pred_check
          %p256 = pneg %p255
        $region46: #{tpu_custom_call.1} parent=31 // pred_check_branch
          %258 = sbr.rel (%p256) target = $region48
        $region47: #{tpu_custom_call.1} parent=31 // pred_region
          %v259 = vld [vmem:[#allocation3] sm:$0xff]
          %v260 = vld [vmem:[#allocation3 + $0x8] sm:$0xff]
          %261 = vst [vmem:[#allocation2] sm:$0xff] %v259
          %262 = vst [vmem:[#allocation2 + $0x8] sm:$0xff] %v260
        $region48: #{tpu_custom_call.1} parent=31 // pred_fallthru
          _
        %v263 = vld [vmem:[#allocation2] sm:$0xff]
        %v264 = vld [vmem:[#allocation2 + $0x8] sm:$0xff]
        %v265 = vld [vmem:[%s221] sm:$0xff]
        %v266 = vld [vmem:[%s221 + $0x8] sm:$0xff]
        %v267 = vld [vmem:[%s221 + $0x10] sm:$0xff]
        %v268 = vld [vmem:[%s221 + $0x18] sm:$0xff]
        %v269 = vld [vmem:[%s221 + $0x20] sm:$0xff]
        %v270 = vld [vmem:[%s221 + $0x28] sm:$0xff]
        %v271 = vld [vmem:[%s221 + $0x30] sm:$0xff]
        %v272 = vld [vmem:[%s221 + $0x38] sm:$0xff]
        %v273 = vld [vmem:[%s221 + $0x40] sm:$0xff]
        %v274 = vld [vmem:[%s221 + $0x48] sm:$0xff]
        %v275 = vld [vmem:[%s221 + $0x50] sm:$0xff]
        %v276 = vld [vmem:[%s221 + $0x58] sm:$0xff]
        %v277 = vld [vmem:[%s221 + $0x60] sm:$0xff]
        %v278 = vld [vmem:[%s221 + $0x68] sm:$0xff]
        %v279 = vld [vmem:[%s221 + $0x70] sm:$0xff]
        %v280 = vld [vmem:[%s221 + $0x78] sm:$0xff]
        %v281 = vld [vmem:[%s221 + $0x80] sm:$0xff]
        %v282 = vld [vmem:[%s221 + $0x88] sm:$0xff]
        %v283 = vld [vmem:[%s221 + $0x90] sm:$0xff]
        %v284 = vld [vmem:[%s221 + $0x98] sm:$0xff]
        %v285 = vld [vmem:[%s221 + $0xa0] sm:$0xff]
        %v286 = vld [vmem:[%s221 + $0xa8] sm:$0xff]
        %v287 = vld [vmem:[%s221 + $0xb0] sm:$0xff]
        %v288 = vld [vmem:[%s221 + $0xb8] sm:$0xff]
        %v289 = vld [vmem:[%s221 + $0xc0] sm:$0xff]
        %v290 = vld [vmem:[%s221 + $0xc8] sm:$0xff]
        %v291 = vld [vmem:[%s221 + $0xd0] sm:$0xff]
        %v292 = vld [vmem:[%s221 + $0xd8] sm:$0xff]
        %v293 = vld [vmem:[%s221 + $0xe0] sm:$0xff]
        %v294 = vld [vmem:[%s221 + $0xe8] sm:$0xff]
        %v295 = vld [vmem:[%s221 + $0xf0] sm:$0xff]
        %v296 = vld [vmem:[%s221 + $0xf8] sm:$0xff]
        %v297 = vld [vmem:[%s230] sm:$0x3]
        %v299 = vlaneseq
        %v300 = vshrl.u32 %v299, 7
        %v301 = vsub.s32 0, %v300
        %v302 = vrot.slane %v297, %v301
        %v303 = vlaneseq
        %v304 = vshrl.u32 %v303, 7
        %v305 = vsub.s32 1, %v304
        %v306 = vrot.slane %v297, %v305
        %v311 = vunpack.c.l.b16 %v263
        %v312 = vunpack.c.h.b16 %v263
        %v313 = vunpack.c.l.b16 %v264
        %v314 = vunpack.c.h.b16 %v264
        %v315 = vpack.c.b16 %v313, %v311
        %v316 = vpack.c.b16 %v314, %v312
        %v351 = vunpack.c.l.b16 %v265
        %v352 = vunpack.c.h.b16 %v265
        %v353 = vunpack.c.l.b16 %v266
        %v354 = vunpack.c.h.b16 %v266
        %v355 = vunpack.c.l.b16 %v267
        %v356 = vunpack.c.h.b16 %v267
        %v357 = vunpack.c.l.b16 %v268
        %v358 = vunpack.c.h.b16 %v268
        %v359 = vunpack.c.l.b16 %v269
        %v360 = vunpack.c.h.b16 %v269
        %v361 = vunpack.c.l.b16 %v270
        %v362 = vunpack.c.h.b16 %v270
        %v363 = vunpack.c.l.b16 %v271
        %v364 = vunpack.c.h.b16 %v271
        %v365 = vunpack.c.l.b16 %v272
        %v366 = vunpack.c.h.b16 %v272
        %v367 = vunpack.c.l.b16 %v273
        %v368 = vunpack.c.h.b16 %v273
        %v369 = vunpack.c.l.b16 %v274
        %v370 = vunpack.c.h.b16 %v274
        %v371 = vunpack.c.l.b16 %v275
        %v372 = vunpack.c.h.b16 %v275
        %v373 = vunpack.c.l.b16 %v276
        %v374 = vunpack.c.h.b16 %v276
        %v375 = vunpack.c.l.b16 %v277
        %v376 = vunpack.c.h.b16 %v277
        %v377 = vunpack.c.l.b16 %v278
        %v378 = vunpack.c.h.b16 %v278
        %v379 = vunpack.c.l.b16 %v279
        %v380 = vunpack.c.h.b16 %v279
        %v381 = vunpack.c.l.b16 %v280
        %v382 = vunpack.c.h.b16 %v280
        %v383 = vunpack.c.l.b16 %v281
        %v384 = vunpack.c.h.b16 %v281
        %v385 = vunpack.c.l.b16 %v282
        %v386 = vunpack.c.h.b16 %v282
        %v387 = vunpack.c.l.b16 %v283
        %v388 = vunpack.c.h.b16 %v283
        %v389 = vunpack.c.l.b16 %v284
        %v390 = vunpack.c.h.b16 %v284
        %v391 = vunpack.c.l.b16 %v285
        %v392 = vunpack.c.h.b16 %v285
        %v393 = vunpack.c.l.b16 %v286
        %v394 = vunpack.c.h.b16 %v286
        %v395 = vunpack.c.l.b16 %v287
        %v396 = vunpack.c.h.b16 %v287
        %v397 = vunpack.c.l.b16 %v288
        %v398 = vunpack.c.h.b16 %v288
        %v399 = vunpack.c.l.b16 %v289
        %v400 = vunpack.c.h.b16 %v289
        %v401 = vunpack.c.l.b16 %v290
        %v402 = vunpack.c.h.b16 %v290
        %v403 = vunpack.c.l.b16 %v291
        %v404 = vunpack.c.h.b16 %v291
        %v405 = vunpack.c.l.b16 %v292
        %v406 = vunpack.c.h.b16 %v292
        %v407 = vunpack.c.l.b16 %v293
        %v408 = vunpack.c.h.b16 %v293
        %v409 = vunpack.c.l.b16 %v294
        %v410 = vunpack.c.h.b16 %v294
        %v411 = vunpack.c.l.b16 %v295
        %v412 = vunpack.c.h.b16 %v295
        %v413 = vunpack.c.l.b16 %v296
        %v414 = vunpack.c.h.b16 %v296
        %v415 = vpack.c.b16 %v353, %v351
        %v416 = vpack.c.b16 %v354, %v352
        %v417 = vpack.c.b16 %v357, %v355
        %v418 = vpack.c.b16 %v358, %v356
        %v419 = vpack.c.b16 %v361, %v359
        %v420 = vpack.c.b16 %v362, %v360
        %v421 = vpack.c.b16 %v365, %v363
        %v422 = vpack.c.b16 %v366, %v364
        %v423 = vpack.c.b16 %v369, %v367
        %v424 = vpack.c.b16 %v370, %v368
        %v425 = vpack.c.b16 %v373, %v371
        %v426 = vpack.c.b16 %v374, %v372
        %v427 = vpack.c.b16 %v377, %v375
        %v428 = vpack.c.b16 %v378, %v376
        %v429 = vpack.c.b16 %v381, %v379
        %v430 = vpack.c.b16 %v382, %v380
        %v431 = vpack.c.b16 %v385, %v383
        %v432 = vpack.c.b16 %v386, %v384
        %v433 = vpack.c.b16 %v389, %v387
        %v434 = vpack.c.b16 %v390, %v388
        %v435 = vpack.c.b16 %v393, %v391
        %v436 = vpack.c.b16 %v394, %v392
        %v437 = vpack.c.b16 %v397, %v395
        %v438 = vpack.c.b16 %v398, %v396
        %v439 = vpack.c.b16 %v401, %v399
        %v440 = vpack.c.b16 %v402, %v400
        %v441 = vpack.c.b16 %v405, %v403
        %v442 = vpack.c.b16 %v406, %v404
        %v443 = vpack.c.b16 %v409, %v407
        %v444 = vpack.c.b16 %v410, %v408
        %v445 = vpack.c.b16 %v413, %v411
        %v446 = vpack.c.b16 %v414, %v412
        %479 = vmatprep.subr.bf16.mxu0 %v430
        %480 = vmatpush1.bf16.msra.mxu0 %v429
        %481 = vmatprep.subr.bf16.mxu0 %v428
        %482 = vmatpush1.bf16.msra.mxu0 %v427
        %483 = vmatprep.subr.bf16.mxu0 %v426
        %484 = vmatpush1.bf16.msra.mxu0 %v425
        %485 = vmatprep.subr.bf16.mxu0 %v424
        %486 = vmatpush1.bf16.msra.mxu0 %v423
        %487 = vmatprep.subr.bf16.mxu0 %v422
        %488 = vmatpush1.bf16.msra.mxu0 %v421
        %489 = vmatprep.subr.bf16.mxu0 %v420
        %490 = vmatpush1.bf16.msra.mxu0 %v419
        %491 = vmatprep.subr.bf16.mxu0 %v418
        %492 = vmatpush1.bf16.msra.mxu0 %v417
        %493 = vmatprep.subr.bf16.mxu0 %v416
        %494 = vmatpush1.bf16.msra.mxu0 %v415
        %495 = vmatprep.subr.bf16.mxu0 %v446
        %496 = vmatpush2.bf16.msra.mxu0 %v445
        %497 = vmatprep.subr.bf16.mxu0 %v444
        %498 = vmatpush2.bf16.msra.mxu0 %v443
        %499 = vmatprep.subr.bf16.mxu0 %v442
        %500 = vmatpush2.bf16.msra.mxu0 %v441
        %501 = vmatprep.subr.bf16.mxu0 %v440
        %502 = vmatpush2.bf16.msra.mxu0 %v439
        %503 = vmatprep.subr.bf16.mxu0 %v438
        %504 = vmatpush2.bf16.msra.mxu0 %v437
        %505 = vmatprep.subr.bf16.mxu0 %v436
        %506 = vmatpush2.bf16.msra.mxu0 %v435
        %507 = vmatprep.subr.bf16.mxu0 %v434
        %508 = vmatpush2.bf16.msra.mxu0 %v433
        %509 = vmatprep.subr.bf16.mxu0 %v432
        %510 = vmatpush2.bf16.msra.mxu0 %v431
        %511 = vmatprep.mubr.bf16.mxu0 %v316
        %512 = vmatmul.mubr.bf16.gmra.mxu0 %v315
        %v513 = vpop.f32.mrf.mxu0
        %v514 = vadd.f32 %v302, %v513
        %v515 = vpop.f32.mrf.mxu0
        %v516 = vadd.f32 %v306, %v515
        %v517 = vpop.f32.mrf.mxu0
        %v518 = vadd.f32 %v302, %v517
        %v519 = vpop.f32.mrf.mxu0
        %v520 = vadd.f32 %v306, %v519
        %521 = vdwg.mxu0
        %p522 = scmp.ne.s32.totalorder %s24, 2
        // Predicated region
        $region49: #{tpu_custom_call.1} parent=31 // pred_check
          %p523 = pneg %p522
        $region50: #{tpu_custom_call.1} parent=31 // pred_check_branch
          %525 = sbr.rel (%p523) target = $region52
        $region51: #{tpu_custom_call.1} parent=31 // pred_region
          %v526 = vmax.f32 %v514, 0.0
          %v527 = vmax.f32 %v516, 0.0
          %v528 = vmax.f32 %v518, 0.0
          %v529 = vmax.f32 %v520, 0.0
          %v530 = vpack.c.bf16 %v528, %v526
          %v531 = vpack.c.bf16 %v529, %v527
          %v534 = vunpack.c.l.b16 %v530
          %v535 = vunpack.c.l.b16 %v531
          %v536 = vunpack.c.h.b16 %v530
          %v537 = vunpack.c.h.b16 %v531
          %v538 = vpack.c.b16 %v535, %v534
          %v539 = vpack.c.b16 %v537, %v536
          %542 = vst [vmem:[#allocation2] sm:$0xff] %v538
          %543 = vst [vmem:[#allocation2 + $0x8] sm:$0xff] %v539
        $region52: #{tpu_custom_call.1} parent=31 // pred_fallthru
          _
        %p544 = scmp.eq.s32.totalorder %s24, 2
        // Predicated region
        $region53: #{tpu_custom_call.1} parent=31 // pred_check
          %p545 = pneg %p544
        $region54: #{tpu_custom_call.1} parent=31 // pred_check_branch
          %547 = sbr.rel (%p545) target = $region56
        $region55: #{tpu_custom_call.1} parent=31 // pred_region
          %548 = vst [vmem:[#allocation9] sm:$0xff] %v514
          %549 = vst [vmem:[#allocation9 + $0x8] sm:$0xff] %v516
          %550 = vst [vmem:[#allocation9 + $0x10] sm:$0xff] %v518
          %551 = vst [vmem:[#allocation9 + $0x18] sm:$0xff] %v520
        $region56: #{tpu_custom_call.1} parent=31 // pred_fallthru
          _
        // Predicated region
        $region57: #{tpu_custom_call.1} parent=31 // pred_check
          %p552 = pneg %p127
        $region58: #{tpu_custom_call.1} parent=31 // pred_check_branch
          %554 = sbr.rel (%p552) target = $region60
        $region59: #{tpu_custom_call.1} parent=31 // pred_region
          %s555 = smul.u32 2, %s23
          %s557 = ssub.s32 512, 512
          %558 = vsyncadd [#allocation5], %s557
          %s559 = smul.addr %s555, 2
          %s560 = smul.addr %s559, 128
          %s561 = scalar_lea.hbm %s3, %s560
          %s562 = sshll.u32 [#allocation9], 4
          %s563 = int_to_ptr.vmem [resolvable:$true] %s562
          %568 = dma.vmem_to_hbm [thread:$0]  %s563, 512, %s561, [#allocation5], 256, 256, 16
        $region60: #{tpu_custom_call.1} parent=31 // pred_fallthru
          _
        // Predicated region
        $region61: #{tpu_custom_call.1} parent=31 // pred_check
          %p569 = pneg %p127
        $region62: #{tpu_custom_call.1} parent=31 // pred_check_branch
          %571 = sbr.rel (%p569) target = $region64
        $region63: #{tpu_custom_call.1} parent=31 // pred_region
          %572 = dma.done [#allocation5], 512
        $region64: #{tpu_custom_call.1} parent=31 // pred_fallthru
          _
      $region32: #{tpu_custom_call.1} parent=5 // pred_fallthru
        _
      %p573 = scmp.le.s32.totalorder 2, %s14
      // Predicated region
      $region65: #{tpu_custom_call.1} parent=5 // pred_check
        %p574 = pneg %p573
      $region66: #{tpu_custom_call.1} parent=5 // pred_check_branch
        %576 = sbr.rel (%p574) target = $region68
      $region67: #{tpu_custom_call.1} parent=5 // pred_region
        %s577 = ssub.s32 %s14, 2
      $region68: #{tpu_custom_call.1} parent=5 // pred_fallthru
        _
    $region6: #{tpu_custom_call.1} parent=1 // loop_footer
      %s18 = sadd.s32 1, %s14
    $region7: #{tpu_custom_call.1} parent=1 // loop_footer_branch
      %13 = sbr.rel target = $region3
    $region8: #{tpu_custom_call.1} parent=1 // loop_exit
      _
    %578 = vsyncpa [#allocation4], 1
    %s579 = scalar_lea.sflag [#allocation4], 1
    %580 = vsyncpa %s579, 1
    %581 = vsyncpa [#allocation7], 1
    %s582 = scalar_lea.sflag [#allocation7], 1
    %583 = vsyncpa %s582, 1
    %584 = vsyncpa [#allocation5], 1
    %s585 = scalar_lea.sflag [#allocation5], 1
    %586 = vsyncpa %s585, 1

</llo_original>
